<compile_context>
chip_gen: v6e
topology: v6e:2x2x1
jax: 0.10.0
libtpu: 0.0.40
codegen_flags: <defaults>
</compile_context>

<pallas_src>
import functools

import jax
import jax.numpy as jnp
from jax.experimental import pallas as pl
from jax.experimental.pallas import tpu as pltpu


def _round_up(v, m):
    return -(-v // m) * m


def resblock_kernel(W, Cin, x_ref, mask_ref, w1_ref, b1_ref, w2_ref, b2_ref,
                    o_ref, p1_ref, p2_ref):
    """Per-image refs (all VMEM):
       x_ref   : (Cp, HW)        f32  one image, channels zero-padded to Cp=8
       mask_ref: (16, HW)        f32  3x3 'same' border masks (rows 0..8 used)
       w1_ref  : (C1, 9*Cin)     bf16 conv1 weights (tap-major, channel-minor)
       b1_ref  : (C1, 1)         f32
       w2_ref  : (C2, 9*C1 + Cp) bf16 conv2 weights with 1x1 shortcut appended
       b2_ref  : (C2, 1)         f32
       o_ref   : (C2, HW)        f32
       p1_ref  : (9*Cin, HW)     f32  scratch: conv1 im2col patch
       p2_ref  : (9*C1 + Cp, HW) f32  scratch: conv2 patch + shortcut tail
    """
    Cp, HW = x_ref.shape
    C1 = w1_ref.shape[0]

    x = x_ref[...]
    masks = mask_ref[...]
    taps = [(dy, dx) for dy in (-1, 0, 1) for dx in (-1, 0, 1)]

    def write_patch(src, rows, patch_ref):
        # im2col: each rolled+masked tap goes straight into its row slot of the
        # scratch patch (no concatenate / double materialization).
        for t, (dy, dx) in enumerate(taps):
            off = dy * W + dx
            if off == 0:
                tap = src                                    # centre tap: always valid
            else:
                tap = pltpu.roll(src, shift=(-off) % HW, axis=1) * masks[t:t + 1, :]
            patch_ref[pl.ds(t * rows, rows), :] = tap[:rows, :]

    # ---- conv1: im2col -> one MXU matmul (bf16 in, f32 acc) -> bias -> ReLU ----
    write_patch(x, Cin, p1_ref)
    h1 = jnp.dot(w1_ref[...], p1_ref[...].astype(jnp.bfloat16),
                 preferred_element_type=jnp.float32)
    h1 = jnp.maximum(h1 + b1_ref[...], 0.0)                  # (C1, HW) f32
    # TODO(synk): Dropout2d(p=0.0) and batchnorm=False are identities; nothing to emit.

    # ---- conv2 + folded 1x1 shortcut: patch = [im2col(h1); x] ----
    write_patch(h1, C1, p2_ref)
    p2_ref[pl.ds(9 * C1, Cp), :] = x                         # shortcut rows (zero-padded)
    h2 = jnp.dot(w2_ref[...], p2_ref[...].astype(jnp.bfloat16),
                 preferred_element_type=jnp.float32) + b2_ref[...]

    # residual add already folded into the matmul; final ReLU, lane-dense store.
    o_ref[...] = jnp.maximum(h2, 0.0).astype(o_ref.dtype)


def prepare_params(params, H, W):
    """Pack weights / biases / border masks ONCE (hoisted out of the hot path)."""
    w1, b1, w2, b2, ws = params        # w1:(3,3,Cin,C1)  w2:(3,3,C1,C2)  ws:(Cin,C2)
    Cin, C1 = w1.shape[2], w1.shape[3]
    C2 = w2.shape[3]
    Cp = _round_up(Cin, 8)

    # conv1 weights -> (C1, 9*Cin), columns (tap-major, channel-minor), bf16.
    w1m = jnp.transpose(w1, (3, 0, 1, 2)).reshape(C1, 9 * Cin).astype(jnp.bfloat16)
    # conv2 weights with the 1x1 shortcut folded in -> (C2, 9*C1 + Cp), bf16.
    w2m = jnp.transpose(w2, (3, 0, 1, 2)).reshape(C2, 9 * C1)
    wsm = jnp.pad(ws.T, ((0, 0), (0, Cp - Cin)))
    w2cat = jnp.concatenate([w2m, wsm], axis=1).astype(jnp.bfloat16)
    b1c = b1.reshape(C1, 1).astype(jnp.float32)
    b2c = b2.reshape(C2, 1).astype(jnp.float32)

    # 3x3 'same' border-validity masks (tap-major); precomputed so the kernel
    # never runs integer div/mod on the VPU. Padded to 16 rows (full sublane tiles).
    m = jnp.arange(H * W, dtype=jnp.int32)
    i, j = m // W, m % W
    masks = jnp.stack(
        [((i + dy >= 0) & (i + dy < H) & (j + dx >= 0) & (j + dx < W)).astype(jnp.float32)
         for dy in (-1, 0, 1) for dx in (-1, 0, 1)])
    masks = jnp.pad(masks, ((0, _round_up(9, 8) - 9), (0, 0)))
    return (masks, w1m, b1c, w2cat, b2c)


def residual_block_cm(x_cm, masks, w1m, b1c, w2cat, b2c, *, H, W, Cin):
    """Core entry point on lane-dense activations.
       x_cm: (Cp, N*H*W) f32 (channels zero-padded to Cp, a multiple of 8).
       Chain blocks through this to avoid per-call NCHW<->CM transposes."""
    Cp, M = x_cm.shape
    HW = H * W
    N = M // HW
    C1, C2 = b1c.shape[0], b2c.shape[0]
    K1, K2 = w1m.shape[1], w2cat.shape[1]
    MR = masks.shape[0]

    flops = 2 * M * (C1 * K1 + C2 * K2)
    bytes_accessed = (4 * M * (Cp + C2) + 4 * MR * HW
                      + 2 * (C1 * K1 + C2 * K2) + 4 * (C1 + C2))

    return pl.pallas_call(
        functools.partial(resblock_kernel, W, Cin),
        out_shape=jax.ShapeDtypeStruct((C2, M), x_cm.dtype),
        grid=(N,),
        in_specs=[
            pl.BlockSpec((Cp, HW), lambda n: (0, n)),    # x: one image per step
            pl.BlockSpec((MR, HW), lambda n: (0, 0)),    # border masks (shared)
            pl.BlockSpec((C1, K1), lambda n: (0, 0)),    # conv1 weights (bf16)
            pl.BlockSpec((C1, 1), lambda n: (0, 0)),     # conv1 bias
            pl.BlockSpec((C2, K2), lambda n: (0, 0)),    # conv2 (+shortcut) weights (bf16)
            pl.BlockSpec((C2, 1), lambda n: (0, 0)),     # conv2 bias
        ],
        out_specs=pl.BlockSpec((C2, HW), lambda n: (0, n)),
        scratch_shapes=[pltpu.VMEM((K1, HW), jnp.float32),   # conv1 im2col patch
                        pltpu.VMEM((K2, HW), jnp.float32)],  # conv2 patch + shortcut tail
        compiler_params=pltpu.CompilerParams(
            dimension_semantics=("parallel",),           # v7x: batch across both TCs
            vmem_limit_bytes=32 * 1024 * 1024),          # explicit guard when scaling up
        cost_estimate=pl.CostEstimate(flops=flops, transcendentals=0,
                                      bytes_accessed=bytes_accessed),
    )(x_cm, masks, w1m, b1c, w2cat, b2c)


@jax.jit
def residual_block(x_nchw, prepped):
    """NCHW convenience wrapper (layout glue only; real work is in the CM kernel)."""
    masks, w1m, b1c, w2cat, b2c = prepped
    N, Cin, H, W = x_nchw.shape
    Cp = _round_up(Cin, 8)
    C2 = b2c.shape[0]

    x_cm = jnp.transpose(x_nchw, (1, 0, 2, 3)).reshape(Cin, N * H * W)
    x_cm = jnp.pad(x_cm, ((0, Cp - Cin), (0, 0)))
    out_cm = residual_block_cm(x_cm, masks, w1m, b1c, w2cat, b2c, H=H, W=W, Cin=Cin)
    return jnp.transpose(out_cm.reshape(C2, N, H, W), (1, 0, 2, 3))


def ref_forward(x_nchw, params):
    """Pure-f32 JAX reference (same math) for a correctness check."""
    w1, b1, w2, b2, ws = params
    dn = ('NCHW', 'HWIO', 'NCHW')
    h1 = jax.lax.conv_general_dilated(
        x_nchw, w1, (1, 1), 'SAME',
        dimension_numbers=jax.lax.conv_dimension_numbers(x_nchw.shape, w1.shape, dn))
    h1 = jnp.maximum(h1 + b1[None, :, None, None], 0.0)
    h2 = jax.lax.conv_general_dilated(
        h1, w2, (1, 1), 'SAME',
        dimension_numbers=jax.lax.conv_dimension_numbers(h1.shape, w2.shape, dn))
    h2 = h2 + b2[None, :, None, None]
    ws4 = ws[None, None]                                               # (1,1,Cin,C2)
    sc = jax.lax.conv_general_dilated(
        x_nchw, ws4, (1, 1), 'SAME',
        dimension_numbers=jax.lax.conv_dimension_numbers(x_nchw.shape, ws4.shape, dn))
    return jnp.maximum(h2 + sc, 0.0)


if __name__ == "__main__":
    key = jax.random.PRNGKey(0)
    k_x, k_w1, k_b1, k_w2, k_b2, k_ws = jax.random.split(key, 6)

    N, Cin, H, W = 2, 4, 16, 16
    C1, C2 = 8, 8

    x = jax.random.normal(k_x, (N, Cin, H, W), jnp.float32)
    w1 = jax.random.normal(k_w1, (3, 3, Cin, C1), jnp.float32) * 0.1
    b1 = jax.random.normal(k_b1, (C1,), jnp.float32) * 0.1
    w2 = jax.random.normal(k_w2, (3, 3, C1, C2), jnp.float32) * 0.1
    b2 = jax.random.normal(k_b2, (C2,), jnp.float32) * 0.1
    ws = jax.random.normal(k_ws, (Cin, C2), jnp.float32) * 0.1
    params = (w1, b1, w2, b2, ws)

    prepped = prepare_params(params, H, W)          # packed once, out of the hot path
    out = jax.block_until_ready(residual_block(x, prepped))
    ref = jax.block_until_ready(ref_forward(x, params))

    assert out.shape == (N, C2, H, W)
    # bf16 MXU inputs (f32 accumulation) vs the pure-f32 reference => loosened tolerance.
    assert jnp.allclose(out, ref, atol=5e-2, rtol=5e-2), float(jnp.max(jnp.abs(out - ref)))
    print("KERNEL_OK")
</pallas_src>

<mosaic_0001>
module attributes {stable_mosaic.version = 11 : i64} {
  func.func @resblock_kernel(%arg0: i32, %arg1: memref<8x256xf32, #tpu.memory_space<vmem>>, %arg2: memref<16x256xf32, #tpu.memory_space<vmem>>, %arg3: memref<8x36xbf16, #tpu.memory_space<vmem>>, %arg4: memref<8x1xf32, #tpu.memory_space<vmem>>, %arg5: memref<8x80xbf16, #tpu.memory_space<vmem>>, %arg6: memref<8x1xf32, #tpu.memory_space<vmem>>, %arg7: memref<8x256xf32, #tpu.memory_space<vmem>>, %arg8: memref<36x256xf32, #tpu.memory_space<vmem>>, %arg9: memref<80x256xf32, #tpu.memory_space<vmem>>) attributes {dimension_semantics = [#tpu.dimension_semantics<parallel>], iteration_bounds = array<i64: 2>, scalar_prefetch = 0 : i64, scratch_operands = 2 : i64, tpu.core_type = #tpu.core_type<tc>, window_params = [{transform_indices = @transform_0, window_bounds = array<i64: 8, 256>}, {pipeline_mode = #tpu.pipeline_mode<synchronous>, transform_indices = @transform_1, window_bounds = array<i64: 16, 256>}, {pipeline_mode = #tpu.pipeline_mode<synchronous>, transform_indices = @transform_2, window_bounds = array<i64: 8, 36>}, {pipeline_mode = #tpu.pipeline_mode<synchronous>, transform_indices = @transform_3, window_bounds = array<i64: 8, 1>}, {pipeline_mode = #tpu.pipeline_mode<synchronous>, transform_indices = @transform_4, window_bounds = array<i64: 8, 80>}, {pipeline_mode = #tpu.pipeline_mode<synchronous>, transform_indices = @transform_5, window_bounds = array<i64: 8, 1>}, {transform_indices = @transform_6, window_bounds = array<i64: 8, 256>}]} {
    %c0 = arith.constant 0 : index
    %c0_0 = arith.constant 0 : index
    %0 = vector.load %arg1[%c0, %c0_0] : memref<8x256xf32, #tpu.memory_space<vmem>>, vector<8x256xf32>
    %c0_1 = arith.constant 0 : index
    %c0_2 = arith.constant 0 : index
    %1 = vector.load %arg2[%c0_1, %c0_2] : memref<16x256xf32, #tpu.memory_space<vmem>>, vector<16x256xf32>
    %c17_i32 = arith.constant 17 : i32
    %2 = tpu.dynamic_rotate %0 by %c17_i32 dim 1 : vector<8x256xf32>, i32 -> vector<8x256xf32>
    %3 = vector.extract_strided_slice %1 {offsets = [0, 0], sizes = [1, 256], strides = [1, 1]} : vector<16x256xf32> to vector<1x256xf32>
    %4 = vector.broadcast %3 : vector<1x256xf32> to vector<8x256xf32>
    %5 = arith.mulf %2, %4 : vector<8x256xf32>
    %6 = vector.extract_strided_slice %5 {offsets = [0, 0], sizes = [4, 256], strides = [1, 1]} : vector<8x256xf32> to vector<4x256xf32>
    %c0_3 = arith.constant 0 : index
    %c0_4 = arith.constant 0 : index
    %7 = vector.load %arg8[%c0_3, %c0_4] : memref<36x256xf32, #tpu.memory_space<vmem>>, vector<4x256xf32>
    tpu.vector_store %arg8[%c0_3, %c0_4], %6 {strides = array<i32>} : memref<36x256xf32, #tpu.memory_space<vmem>>, vector<4x256xf32>,
    %c16_i32 = arith.constant 16 : i32
    %8 = tpu.dynamic_rotate %0 by %c16_i32 dim 1 : vector<8x256xf32>, i32 -> vector<8x256xf32>
    %9 = vector.extract_strided_slice %1 {offsets = [1, 0], sizes = [1, 256], strides = [1, 1]} : vector<16x256xf32> to vector<1x256xf32>
    %10 = vector.broadcast %9 : vector<1x256xf32> to vector<8x256xf32>
    %11 = arith.mulf %8, %10 : vector<8x256xf32>
    %12 = vector.extract_strided_slice %11 {offsets = [0, 0], sizes = [4, 256], strides = [1, 1]} : vector<8x256xf32> to vector<4x256xf32>
    %c4 = arith.constant 4 : index
    %c0_5 = arith.constant 0 : index
    %13 = vector.load %arg8[%c4, %c0_5] : memref<36x256xf32, #tpu.memory_space<vmem>>, vector<4x256xf32>
    tpu.vector_store %arg8[%c4, %c0_5], %12 {strides = array<i32>} : memref<36x256xf32, #tpu.memory_space<vmem>>, vector<4x256xf32>,
    %c15_i32 = arith.constant 15 : i32
    %14 = tpu.dynamic_rotate %0 by %c15_i32 dim 1 : vector<8x256xf32>, i32 -> vector<8x256xf32>
    %15 = vector.extract_strided_slice %1 {offsets = [2, 0], sizes = [1, 256], strides = [1, 1]} : vector<16x256xf32> to vector<1x256xf32>
    %16 = vector.broadcast %15 : vector<1x256xf32> to vector<8x256xf32>
    %17 = arith.mulf %14, %16 : vector<8x256xf32>
    %18 = vector.extract_strided_slice %17 {offsets = [0, 0], sizes = [4, 256], strides = [1, 1]} : vector<8x256xf32> to vector<4x256xf32>
    %c8 = arith.constant 8 : index
    %c0_6 = arith.constant 0 : index
    %19 = vector.load %arg8[%c8, %c0_6] : memref<36x256xf32, #tpu.memory_space<vmem>>, vector<4x256xf32>
    tpu.vector_store %arg8[%c8, %c0_6], %18 {strides = array<i32>} : memref<36x256xf32, #tpu.memory_space<vmem>>, vector<4x256xf32>,
    %c1_i32 = arith.constant 1 : i32
    %20 = tpu.dynamic_rotate %0 by %c1_i32 dim 1 : vector<8x256xf32>, i32 -> vector<8x256xf32>
    %21 = vector.extract_strided_slice %1 {offsets = [3, 0], sizes = [1, 256], strides = [1, 1]} : vector<16x256xf32> to vector<1x256xf32>
    %22 = vector.broadcast %21 : vector<1x256xf32> to vector<8x256xf32>
    %23 = arith.mulf %20, %22 : vector<8x256xf32>
    %24 = vector.extract_strided_slice %23 {offsets = [0, 0], sizes = [4, 256], strides = [1, 1]} : vector<8x256xf32> to vector<4x256xf32>
    %c12 = arith.constant 12 : index
    %c0_7 = arith.constant 0 : index
    %25 = vector.load %arg8[%c12, %c0_7] : memref<36x256xf32, #tpu.memory_space<vmem>>, vector<4x256xf32>
    tpu.vector_store %arg8[%c12, %c0_7], %24 {strides = array<i32>} : memref<36x256xf32, #tpu.memory_space<vmem>>, vector<4x256xf32>,
    %26 = vector.extract_strided_slice %0 {offsets = [0, 0], sizes = [4, 256], strides = [1, 1]} : vector<8x256xf32> to vector<4x256xf32>
    %c16 = arith.constant 16 : index
    %c0_8 = arith.constant 0 : index
    %27 = vector.load %arg8[%c16, %c0_8] : memref<36x256xf32, #tpu.memory_space<vmem>>, vector<4x256xf32>
    tpu.vector_store %arg8[%c16, %c0_8], %26 {strides = array<i32>} : memref<36x256xf32, #tpu.memory_space<vmem>>, vector<4x256xf32>,
    %c255_i32 = arith.constant 255 : i32
    %28 = tpu.dynamic_rotate %0 by %c255_i32 dim 1 : vector<8x256xf32>, i32 -> vector<8x256xf32>
    %29 = vector.extract_strided_slice %1 {offsets = [5, 0], sizes = [1, 256], strides = [1, 1]} : vector<16x256xf32> to vector<1x256xf32>
    %30 = vector.broadcast %29 : vector<1x256xf32> to vector<8x256xf32>
    %31 = arith.mulf %28, %30 : vector<8x256xf32>
    %32 = vector.extract_strided_slice %31 {offsets = [0, 0], sizes = [4, 256], strides = [1, 1]} : vector<8x256xf32> to vector<4x256xf32>
    %c20 = arith.constant 20 : index
    %c0_9 = arith.constant 0 : index
    %33 = vector.load %arg8[%c20, %c0_9] : memref<36x256xf32, #tpu.memory_space<vmem>>, vector<4x256xf32>
    tpu.vector_store %arg8[%c20, %c0_9], %32 {strides = array<i32>} : memref<36x256xf32, #tpu.memory_space<vmem>>, vector<4x256xf32>,
    %c241_i32 = arith.constant 241 : i32
    %34 = tpu.dynamic_rotate %0 by %c241_i32 dim 1 : vector<8x256xf32>, i32 -> vector<8x256xf32>
    %35 = vector.extract_strided_slice %1 {offsets = [6, 0], sizes = [1, 256], strides = [1, 1]} : vector<16x256xf32> to vector<1x256xf32>
    %36 = vector.broadcast %35 : vector<1x256xf32> to vector<8x256xf32>
    %37 = arith.mulf %34, %36 : vector<8x256xf32>
    %38 = vector.extract_strided_slice %37 {offsets = [0, 0], sizes = [4, 256], strides = [1, 1]} : vector<8x256xf32> to vector<4x256xf32>
    %c24 = arith.constant 24 : index
    %c0_10 = arith.constant 0 : index
    %39 = vector.load %arg8[%c24, %c0_10] : memref<36x256xf32, #tpu.memory_space<vmem>>, vector<4x256xf32>
    tpu.vector_store %arg8[%c24, %c0_10], %38 {strides = array<i32>} : memref<36x256xf32, #tpu.memory_space<vmem>>, vector<4x256xf32>,
    %c240_i32 = arith.constant 240 : i32
    %40 = tpu.dynamic_rotate %0 by %c240_i32 dim 1 : vector<8x256xf32>, i32 -> vector<8x256xf32>
    %41 = vector.extract_strided_slice %1 {offsets = [7, 0], sizes = [1, 256], strides = [1, 1]} : vector<16x256xf32> to vector<1x256xf32>
    %42 = vector.broadcast %41 : vector<1x256xf32> to vector<8x256xf32>
    %43 = arith.mulf %40, %42 : vector<8x256xf32>
    %44 = vector.extract_strided_slice %43 {offsets = [0, 0], sizes = [4, 256], strides = [1, 1]} : vector<8x256xf32> to vector<4x256xf32>
    %c28 = arith.constant 28 : index
    %c0_11 = arith.constant 0 : index
    %45 = vector.load %arg8[%c28, %c0_11] : memref<36x256xf32, #tpu.memory_space<vmem>>, vector<4x256xf32>
    tpu.vector_store %arg8[%c28, %c0_11], %44 {strides = array<i32>} : memref<36x256xf32, #tpu.memory_space<vmem>>, vector<4x256xf32>,
    %c239_i32 = arith.constant 239 : i32
    %46 = tpu.dynamic_rotate %0 by %c239_i32 dim 1 : vector<8x256xf32>, i32 -> vector<8x256xf32>
    %47 = vector.extract_strided_slice %1 {offsets = [8, 0], sizes = [1, 256], strides = [1, 1]} : vector<16x256xf32> to vector<1x256xf32>
    %48 = vector.broadcast %47 : vector<1x256xf32> to vector<8x256xf32>
    %49 = arith.mulf %46, %48 : vector<8x256xf32>
    %50 = vector.extract_strided_slice %49 {offsets = [0, 0], sizes = [4, 256], strides = [1, 1]} : vector<8x256xf32> to vector<4x256xf32>
    %c32 = arith.constant 32 : index
    %c0_12 = arith.constant 0 : index
    %51 = vector.load %arg8[%c32, %c0_12] : memref<36x256xf32, #tpu.memory_space<vmem>>, vector<4x256xf32>
    tpu.vector_store %arg8[%c32, %c0_12], %50 {strides = array<i32>} : memref<36x256xf32, #tpu.memory_space<vmem>>, vector<4x256xf32>,
    %c0_13 = arith.constant 0 : index
    %c0_14 = arith.constant 0 : index
    %52 = vector.load %arg3[%c0_13, %c0_14] : memref<8x36xbf16, #tpu.memory_space<vmem>>, vector<8x36xbf16>
    %c0_15 = arith.constant 0 : index
    %c0_16 = arith.constant 0 : index
    %53 = vector.load %arg8[%c0_15, %c0_16] : memref<36x256xf32, #tpu.memory_space<vmem>>, vector<36x256xf32>
    %54 = arith.truncf %53 : vector<36x256xf32> to vector<36x256xbf16>
    %cst = arith.constant dense<0.000000e+00> : vector<8x256xf32>
    %55 = tpu.matmul %52, %54, %cst {dimension_numbers = #tpu.dot_dimension_numbers<[1], [0], [0], [1], [0, 0, 1, 1], [], []>} : vector<8x36xbf16>, vector<36x256xbf16>, vector<8x256xf32> -> vector<8x256xf32>
    %c0_17 = arith.constant 0 : index
    %c0_18 = arith.constant 0 : index
    %56 = vector.load %arg4[%c0_17, %c0_18] : memref<8x1xf32, #tpu.memory_space<vmem>>, vector<8x1xf32>
    %57 = vector.broadcast %56 : vector<8x1xf32> to vector<8x256xf32>
    %58 = arith.addf %55, %57 : vector<8x256xf32>
    %cst_19 = arith.constant 0.000000e+00 : f32
    %59 = vector.broadcast %cst_19 : f32 to vector<8x256xf32>
    %60 = arith.maximumf %58, %59 : vector<8x256xf32>
    %c17_i32_20 = arith.constant 17 : i32
    %61 = tpu.dynamic_rotate %60 by %c17_i32_20 dim 1 : vector<8x256xf32>, i32 -> vector<8x256xf32>
    %62 = vector.extract_strided_slice %1 {offsets = [0, 0], sizes = [1, 256], strides = [1, 1]} : vector<16x256xf32> to vector<1x256xf32>
    %63 = vector.broadcast %62 : vector<1x256xf32> to vector<8x256xf32>
    %64 = arith.mulf %61, %63 : vector<8x256xf32>
    %c0_21 = arith.constant 0 : index
    %c0_22 = arith.constant 0 : index
    %65 = vector.load %arg9[%c0_21, %c0_22] : memref<80x256xf32, #tpu.memory_space<vmem>>, vector<8x256xf32>
    tpu.vector_store %arg9[%c0_21, %c0_22], %64 {strides = array<i32>} : memref<80x256xf32, #tpu.memory_space<vmem>>, vector<8x256xf32>,
    %c16_i32_23 = arith.constant 16 : i32
    %66 = tpu.dynamic_rotate %60 by %c16_i32_23 dim 1 : vector<8x256xf32>, i32 -> vector<8x256xf32>
    %67 = vector.extract_strided_slice %1 {offsets = [1, 0], sizes = [1, 256], strides = [1, 1]} : vector<16x256xf32> to vector<1x256xf32>
    %68 = vector.broadcast %67 : vector<1x256xf32> to vector<8x256xf32>
    %69 = arith.mulf %66, %68 : vector<8x256xf32>
    %c8_24 = arith.constant 8 : index
    %c0_25 = arith.constant 0 : index
    %70 = vector.load %arg9[%c8_24, %c0_25] : memref<80x256xf32, #tpu.memory_space<vmem>>, vector<8x256xf32>
    tpu.vector_store %arg9[%c8_24, %c0_25], %69 {strides = array<i32>} : memref<80x256xf32, #tpu.memory_space<vmem>>, vector<8x256xf32>,
    %c15_i32_26 = arith.constant 15 : i32
    %71 = tpu.dynamic_rotate %60 by %c15_i32_26 dim 1 : vector<8x256xf32>, i32 -> vector<8x256xf32>
    %72 = vector.extract_strided_slice %1 {offsets = [2, 0], sizes = [1, 256], strides = [1, 1]} : vector<16x256xf32> to vector<1x256xf32>
    %73 = vector.broadcast %72 : vector<1x256xf32> to vector<8x256xf32>
    %74 = arith.mulf %71, %73 : vector<8x256xf32>
    %c16_27 = arith.constant 16 : index
    %c0_28 = arith.constant 0 : index
    %75 = vector.load %arg9[%c16_27, %c0_28] : memref<80x256xf32, #tpu.memory_space<vmem>>, vector<8x256xf32>
    tpu.vector_store %arg9[%c16_27, %c0_28], %74 {strides = array<i32>} : memref<80x256xf32, #tpu.memory_space<vmem>>, vector<8x256xf32>,
    %c1_i32_29 = arith.constant 1 : i32
    %76 = tpu.dynamic_rotate %60 by %c1_i32_29 dim 1 : vector<8x256xf32>, i32 -> vector<8x256xf32>
    %77 = vector.extract_strided_slice %1 {offsets = [3, 0], sizes = [1, 256], strides = [1, 1]} : vector<16x256xf32> to vector<1x256xf32>
    %78 = vector.broadcast %77 : vector<1x256xf32> to vector<8x256xf32>
    %79 = arith.mulf %76, %78 : vector<8x256xf32>
    %c24_30 = arith.constant 24 : index
    %c0_31 = arith.constant 0 : index
    %80 = vector.load %arg9[%c24_30, %c0_31] : memref<80x256xf32, #tpu.memory_space<vmem>>, vector<8x256xf32>
    tpu.vector_store %arg9[%c24_30, %c0_31], %79 {strides = array<i32>} : memref<80x256xf32, #tpu.memory_space<vmem>>, vector<8x256xf32>,
    %c32_32 = arith.constant 32 : index
    %c0_33 = arith.constant 0 : index
    %81 = vector.load %arg9[%c32_32, %c0_33] : memref<80x256xf32, #tpu.memory_space<vmem>>, vector<8x256xf32>
    tpu.vector_store %arg9[%c32_32, %c0_33], %60 {strides = array<i32>} : memref<80x256xf32, #tpu.memory_space<vmem>>, vector<8x256xf32>,
    %c255_i32_34 = arith.constant 255 : i32
    %82 = tpu.dynamic_rotate %60 by %c255_i32_34 dim 1 : vector<8x256xf32>, i32 -> vector<8x256xf32>
    %83 = vector.extract_strided_slice %1 {offsets = [5, 0], sizes = [1, 256], strides = [1, 1]} : vector<16x256xf32> to vector<1x256xf32>
    %84 = vector.broadcast %83 : vector<1x256xf32> to vector<8x256xf32>
    %85 = arith.mulf %82, %84 : vector<8x256xf32>
    %c40 = arith.constant 40 : index
    %c0_35 = arith.constant 0 : index
    %86 = vector.load %arg9[%c40, %c0_35] : memref<80x256xf32, #tpu.memory_space<vmem>>, vector<8x256xf32>
    tpu.vector_store %arg9[%c40, %c0_35], %85 {strides = array<i32>} : memref<80x256xf32, #tpu.memory_space<vmem>>, vector<8x256xf32>,
    %c241_i32_36 = arith.constant 241 : i32
    %87 = tpu.dynamic_rotate %60 by %c241_i32_36 dim 1 : vector<8x256xf32>, i32 -> vector<8x256xf32>
    %88 = vector.extract_strided_slice %1 {offsets = [6, 0], sizes = [1, 256], strides = [1, 1]} : vector<16x256xf32> to vector<1x256xf32>
    %89 = vector.broadcast %88 : vector<1x256xf32> to vector<8x256xf32>
    %90 = arith.mulf %87, %89 : vector<8x256xf32>
    %c48 = arith.constant 48 : index
    %c0_37 = arith.constant 0 : index
    %91 = vector.load %arg9[%c48, %c0_37] : memref<80x256xf32, #tpu.memory_space<vmem>>, vector<8x256xf32>
    tpu.vector_store %arg9[%c48, %c0_37], %90 {strides = array<i32>} : memref<80x256xf32, #tpu.memory_space<vmem>>, vector<8x256xf32>,
    %c240_i32_38 = arith.constant 240 : i32
    %92 = tpu.dynamic_rotate %60 by %c240_i32_38 dim 1 : vector<8x256xf32>, i32 -> vector<8x256xf32>
    %93 = vector.extract_strided_slice %1 {offsets = [7, 0], sizes = [1, 256], strides = [1, 1]} : vector<16x256xf32> to vector<1x256xf32>
    %94 = vector.broadcast %93 : vector<1x256xf32> to vector<8x256xf32>
    %95 = arith.mulf %92, %94 : vector<8x256xf32>
    %c56 = arith.constant 56 : index
    %c0_39 = arith.constant 0 : index
    %96 = vector.load %arg9[%c56, %c0_39] : memref<80x256xf32, #tpu.memory_space<vmem>>, vector<8x256xf32>
    tpu.vector_store %arg9[%c56, %c0_39], %95 {strides = array<i32>} : memref<80x256xf32, #tpu.memory_space<vmem>>, vector<8x256xf32>,
    %c239_i32_40 = arith.constant 239 : i32
    %97 = tpu.dynamic_rotate %60 by %c239_i32_40 dim 1 : vector<8x256xf32>, i32 -> vector<8x256xf32>
    %98 = vector.extract_strided_slice %1 {offsets = [8, 0], sizes = [1, 256], strides = [1, 1]} : vector<16x256xf32> to vector<1x256xf32>
    %99 = vector.broadcast %98 : vector<1x256xf32> to vector<8x256xf32>
    %100 = arith.mulf %97, %99 : vector<8x256xf32>
    %c64 = arith.constant 64 : index
    %c0_41 = arith.constant 0 : index
    %101 = vector.load %arg9[%c64, %c0_41] : memref<80x256xf32, #tpu.memory_space<vmem>>, vector<8x256xf32>
    tpu.vector_store %arg9[%c64, %c0_41], %100 {strides = array<i32>} : memref<80x256xf32, #tpu.memory_space<vmem>>, vector<8x256xf32>,
    %c72 = arith.constant 72 : index
    %c0_42 = arith.constant 0 : index
    %102 = vector.load %arg9[%c72, %c0_42] : memref<80x256xf32, #tpu.memory_space<vmem>>, vector<8x256xf32>
    tpu.vector_store %arg9[%c72, %c0_42], %0 {strides = array<i32>} : memref<80x256xf32, #tpu.memory_space<vmem>>, vector<8x256xf32>,
    %c0_43 = arith.constant 0 : index
    %c0_44 = arith.constant 0 : index
    %103 = vector.load %arg5[%c0_43, %c0_44] : memref<8x80xbf16, #tpu.memory_space<vmem>>, vector<8x80xbf16>
    %c0_45 = arith.constant 0 : index
    %c0_46 = arith.constant 0 : index
    %104 = vector.load %arg9[%c0_45, %c0_46] : memref<80x256xf32, #tpu.memory_space<vmem>>, vector<80x256xf32>
    %105 = arith.truncf %104 : vector<80x256xf32> to vector<80x256xbf16>
    %cst_47 = arith.constant dense<0.000000e+00> : vector<8x256xf32>
    %106 = tpu.matmul %103, %105, %cst_47 {dimension_numbers = #tpu.dot_dimension_numbers<[1], [0], [0], [1], [0, 0, 1, 1], [], []>} : vector<8x80xbf16>, vector<80x256xbf16>, vector<8x256xf32> -> vector<8x256xf32>
    %c0_48 = arith.constant 0 : index
    %c0_49 = arith.constant 0 : index
    %107 = vector.load %arg6[%c0_48, %c0_49] : memref<8x1xf32, #tpu.memory_space<vmem>>, vector<8x1xf32>
    %108 = vector.broadcast %107 : vector<8x1xf32> to vector<8x256xf32>
    %109 = arith.addf %106, %108 : vector<8x256xf32>
    %cst_50 = arith.constant 0.000000e+00 : f32
    %110 = vector.broadcast %cst_50 : f32 to vector<8x256xf32>
    %111 = arith.maximumf %109, %110 : vector<8x256xf32>
    %c0_51 = arith.constant 0 : index
    %c0_52 = arith.constant 0 : index
    %112 = vector.load %arg7[%c0_51, %c0_52] : memref<8x256xf32, #tpu.memory_space<vmem>>, vector<8x256xf32>
    tpu.vector_store %arg7[%c0_51, %c0_52], %111 {strides = array<i32>} : memref<8x256xf32, #tpu.memory_space<vmem>>, vector<8x256xf32>,
    return
  }
  func.func @transform_0(%arg0: i32) -> (i32, i32) {
    %c0_i32 = arith.constant 0 : i32
    %c0_i32_0 = arith.constant 0 : i32
    return %c0_i32, %arg0 : i32, i32
  }
  func.func @transform_1(%arg0: i32) -> (i32, i32) {
    %c0_i32 = arith.constant 0 : i32
    %c0_i32_0 = arith.constant 0 : i32
    %c0_i32_1 = arith.constant 0 : i32
    return %c0_i32, %c0_i32_0 : i32, i32
  }
  func.func @transform_2(%arg0: i32) -> (i32, i32) {
    %c0_i32 = arith.constant 0 : i32
    %c0_i32_0 = arith.constant 0 : i32
    %c0_i32_1 = arith.constant 0 : i32
    return %c0_i32, %c0_i32_0 : i32, i32
  }
  func.func @transform_3(%arg0: i32) -> (i32, i32) {
    %c0_i32 = arith.constant 0 : i32
    %c0_i32_0 = arith.constant 0 : i32
    %c0_i32_1 = arith.constant 0 : i32
    return %c0_i32, %c0_i32_0 : i32, i32
  }
  func.func @transform_4(%arg0: i32) -> (i32, i32) {
    %c0_i32 = arith.constant 0 : i32
    %c0_i32_0 = arith.constant 0 : i32
    %c0_i32_1 = arith.constant 0 : i32
    return %c0_i32, %c0_i32_0 : i32, i32
  }
  func.func @transform_5(%arg0: i32) -> (i32, i32) {
    %c0_i32 = arith.constant 0 : i32
    %c0_i32_0 = arith.constant 0 : i32
    %c0_i32_1 = arith.constant 0 : i32
    return %c0_i32, %c0_i32_0 : i32, i32
  }
  func.func @transform_6(%arg0: i32) -> (i32, i32) {
    %c0_i32 = arith.constant 0 : i32
    %c0_i32_0 = arith.constant 0 : i32
    return %c0_i32, %arg0 : i32, i32
  }
}

</mosaic_0001>

<llo_original>
// kernel: residual_block.1
$region0: #{residual_block.1}
  #allocation0 [shape = 'u32[]', space=smem, size = 0x4, offset = 0x4, fixed_abs, tag = 'smem constant byte address 0x4 - core index']
  #allocation1 [shape = 'u32[144,128]{1,0:T(1,128)}', space=vmem, size = 0x12000, scoped, tag = 'internal scratch']
  #allocation2 [shape = 'f32[36,256]{1,0:T(8,128)}', space=vmem, size = 0xa000, scoped, tag = 'scratch operand']
  #allocation3 [shape = 'f32[80,256]{1,0:T(8,128)}', space=vmem, size = 0x14000, scoped, tag = 'scratch operand']
  %s0 = inlined_call_operand.vmem [shape: f32[8,512], index: 0, kind: input, shape index: {}]
  %s1 = inlined_call_operand.vmem [shape: f32[16,256], index: 1, kind: input, shape index: {}]
  %s2 = inlined_call_operand.vmem [shape: bf16[8,36], index: 2, kind: input, shape index: {}]
  %s3 = inlined_call_operand.vmem [shape: f32[8,1], index: 3, kind: input, shape index: {}]
  %s4 = inlined_call_operand.vmem [shape: bf16[8,80], index: 4, kind: input, shape index: {}]
  %s5 = inlined_call_operand.vmem [shape: f32[8,1], index: 5, kind: input, shape index: {}]
  %s6 = inlined_call_operand.vmem [shape: f32[8,512], index: 6, kind: output, shape index: {}]
  %s7 = sld [smem:[#allocation0]]
  $region57: #{residual_block.1} parent=0
    _
  %s9 = ssub.s32 1, %s7
  %s10 = scalar_select 0, %s9, %s7
  loop: start=0, step=1, limit=4
  $region2: #{residual_block.1} parent=0 // loop_pre_header
    _
  $region3: #{residual_block.1} parent=0 // loop_header
    %s12 = sphi 0, %s16
    %p13 = scmp.ge.s32.totalorder %s12, 4
    %s22 = sphi 0, %s24
    %s25 = sphi 0, %s22
    %s26 = sphi 0, %s25
    %s42 = sphi 0, %s26
    %s46 = sphi 0, %s46
    %s48 = sphi 0, %s46
    %s49 = sphi 0, %s48
    %s63 = sphi 0, %s49
    %s67 = sphi 0, %s67
    %s69 = sphi 0, %s67
    %s70 = sphi 0, %s69
    %s84 = sphi 0, %s70
    %s88 = sphi 0, %s88
    %s90 = sphi 0, %s88
    %s91 = sphi 0, %s90
    %s105 = sphi 0, %s91
    %s109 = sphi 0, %s109
    %s111 = sphi 0, %s109
    %s112 = sphi 0, %s111
    %s126 = sphi 0, %s112
    %s130 = sphi 0, %s130
    %s132 = sphi 0, %s130
    %s133 = sphi 0, %s132
    %s147 = sphi 0, %s133
    %s153 = sphi 0, %s155
    %s156 = sphi 0, %s153
    %s157 = sphi 0, %s156
    %s173 = sphi 0, %s157
  $region4: #{residual_block.1} parent=0 // loop_header_branch
    %15 = sbr.rel (%p13) target = $region8
  $region5: #{residual_block.1} parent=0 // loop_body
    %s17 = ssub.s32 %s12, 1
    %s18 = ssub.s32 %s12, 2
    %s19 = sadd.s32 %s12, 1
    %s20 = ssub.s32 %s12, %s19
    %p21 = scmp.eq.s32.totalorder %s20, 0
    %s23 = sadd.s32 %s22, 1
    %s24 = scalar_select %p21, %s22, %s23
    %p27 = pneg %p21
    %p28 = scmp.eq.s32.totalorder %s12, 1
    %p29 = por %p27, %p28
    %p30 = scmp.ne.s32.totalorder %s22, %s25
    %p31 = scmp.eq.s32.totalorder %s12, 0
    %p32 = por %p30, %p31
    %p33 = scmp.ne.s32.totalorder %s22, %s25
    %p34 = scmp.eq.s32.totalorder %s17, 1
    %p35 = por %p33, %p34
    %p36 = scmp.ne.s32.totalorder %s25, %s26
    %p37 = scmp.eq.s32.totalorder %s17, 0
    %p38 = por %p36, %p37
    %p39 = scmp.ne.s32.totalorder %s25, %s26
    %p40 = scmp.eq.s32.totalorder %s18, 1
    %p41 = por %p39, %p40
    %p43 = scmp.ne.s32.totalorder %s26, %s42
    %p44 = scmp.eq.s32.totalorder %s18, 0
    %p45 = por %p43, %p44
    %s47 = sadd.s32 %s46, 1
    %p50 = scmp.eq.s32.totalorder %s12, 1
    %p51 = scmp.ne.s32.totalorder %s46, %s48
    %p52 = scmp.eq.s32.totalorder %s12, 0
    %p53 = por %p51, %p52
    %p54 = scmp.ne.s32.totalorder %s46, %s48
    %p55 = scmp.eq.s32.totalorder %s17, 1
    %p56 = por %p54, %p55
    %p57 = scmp.ne.s32.totalorder %s48, %s49
    %p58 = scmp.eq.s32.totalorder %s17, 0
    %p59 = por %p57, %p58
    %p60 = scmp.ne.s32.totalorder %s48, %s49
    %p61 = scmp.eq.s32.totalorder %s18, 1
    %p62 = por %p60, %p61
    %p64 = scmp.ne.s32.totalorder %s49, %s63
    %p65 = scmp.eq.s32.totalorder %s18, 0
    %p66 = por %p64, %p65
    %s68 = sadd.s32 %s67, 1
    %p71 = scmp.eq.s32.totalorder %s12, 1
    %p72 = scmp.ne.s32.totalorder %s67, %s69
    %p73 = scmp.eq.s32.totalorder %s12, 0
    %p74 = por %p72, %p73
    %p75 = scmp.ne.s32.totalorder %s67, %s69
    %p76 = scmp.eq.s32.totalorder %s17, 1
    %p77 = por %p75, %p76
    %p78 = scmp.ne.s32.totalorder %s69, %s70
    %p79 = scmp.eq.s32.totalorder %s17, 0
    %p80 = por %p78, %p79
    %p81 = scmp.ne.s32.totalorder %s69, %s70
    %p82 = scmp.eq.s32.totalorder %s18, 1
    %p83 = por %p81, %p82
    %p85 = scmp.ne.s32.totalorder %s70, %s84
    %p86 = scmp.eq.s32.totalorder %s18, 0
    %p87 = por %p85, %p86
    %s89 = sadd.s32 %s88, 1
    %p92 = scmp.eq.s32.totalorder %s12, 1
    %p93 = scmp.ne.s32.totalorder %s88, %s90
    %p94 = scmp.eq.s32.totalorder %s12, 0
    %p95 = por %p93, %p94
    %p96 = scmp.ne.s32.totalorder %s88, %s90
    %p97 = scmp.eq.s32.totalorder %s17, 1
    %p98 = por %p96, %p97
    %p99 = scmp.ne.s32.totalorder %s90, %s91
    %p100 = scmp.eq.s32.totalorder %s17, 0
    %p101 = por %p99, %p100
    %p102 = scmp.ne.s32.totalorder %s90, %s91
    %p103 = scmp.eq.s32.totalorder %s18, 1
    %p104 = por %p102, %p103
    %p106 = scmp.ne.s32.totalorder %s91, %s105
    %p107 = scmp.eq.s32.totalorder %s18, 0
    %p108 = por %p106, %p107
    %s110 = sadd.s32 %s109, 1
    %p113 = scmp.eq.s32.totalorder %s12, 1
    %p114 = scmp.ne.s32.totalorder %s109, %s111
    %p115 = scmp.eq.s32.totalorder %s12, 0
    %p116 = por %p114, %p115
    %p117 = scmp.ne.s32.totalorder %s109, %s111
    %p118 = scmp.eq.s32.totalorder %s17, 1
    %p119 = por %p117, %p118
    %p120 = scmp.ne.s32.totalorder %s111, %s112
    %p121 = scmp.eq.s32.totalorder %s17, 0
    %p122 = por %p120, %p121
    %p123 = scmp.ne.s32.totalorder %s111, %s112
    %p124 = scmp.eq.s32.totalorder %s18, 1
    %p125 = por %p123, %p124
    %p127 = scmp.ne.s32.totalorder %s112, %s126
    %p128 = scmp.eq.s32.totalorder %s18, 0
    %p129 = por %p127, %p128
    %s131 = sadd.s32 %s130, 1
    %p134 = scmp.eq.s32.totalorder %s12, 1
    %p135 = scmp.ne.s32.totalorder %s130, %s132
    %p136 = scmp.eq.s32.totalorder %s12, 0
    %p137 = por %p135, %p136
    %p138 = scmp.ne.s32.totalorder %s130, %s132
    %p139 = scmp.eq.s32.totalorder %s17, 1
    %p140 = por %p138, %p139
    %p141 = scmp.ne.s32.totalorder %s132, %s133
    %p142 = scmp.eq.s32.totalorder %s17, 0
    %p143 = por %p141, %p142
    %p144 = scmp.ne.s32.totalorder %s132, %s133
    %p145 = scmp.eq.s32.totalorder %s18, 1
    %p146 = por %p144, %p145
    %p148 = scmp.ne.s32.totalorder %s133, %s147
    %p149 = scmp.eq.s32.totalorder %s18, 0
    %p150 = por %p148, %p149
    %s151 = ssub.s32 %s12, %s19
    %p152 = scmp.eq.s32.totalorder %s151, 0
    %s154 = sadd.s32 %s153, 1
    %s155 = scalar_select %p152, %s153, %s154
    %p158 = pneg %p152
    %p159 = scmp.eq.s32.totalorder %s12, 1
    %p160 = por %p158, %p159
    %p161 = scmp.ne.s32.totalorder %s153, %s156
    %p162 = scmp.eq.s32.totalorder %s12, 0
    %p163 = por %p161, %p162
    %p164 = scmp.ne.s32.totalorder %s153, %s156
    %p165 = scmp.eq.s32.totalorder %s17, 1
    %p166 = por %p164, %p165
    %p167 = scmp.ne.s32.totalorder %s156, %s157
    %p168 = scmp.eq.s32.totalorder %s17, 0
    %p169 = por %p167, %p168
    %p170 = scmp.ne.s32.totalorder %s156, %s157
    %p171 = scmp.eq.s32.totalorder %s18, 1
    %p172 = por %p170, %p171
    %p174 = scmp.ne.s32.totalorder %s157, %s173
    %p175 = scmp.eq.s32.totalorder %s18, 0
    %p176 = por %p174, %p175
    %p177 = scmp.le.s32.totalorder 1, %s12
    %p178 = scmp.lt.s32.totalorder %s12, 3
    %p179 = pnand %p177, %p178
    %p180 = pneg %p179
    // Predicated region
    $region9: #{residual_block.1} parent=5 // pred_check
      _
    $region10: #{residual_block.1} parent=5 // pred_check_branch
      %182 = sbr.rel (%p179) target = $region12
    $region11: #{residual_block.1} parent=5 // pred_region
      %s183 = ssub.s32 %s12, 1
      // Predicated region
      $region13: #{residual_block.1} parent=11 // pred_check
        %p184 = pneg %p59
      $region14: #{residual_block.1} parent=11 // pred_check_branch
        %186 = sbr.rel (%p184) target = $region16
      $region15: #{residual_block.1} parent=11 // pred_region
        _
      $region16: #{residual_block.1} parent=11 // pred_fallthru
        _
      // Predicated region
      $region17: #{residual_block.1} parent=11 // pred_check
        %p187 = pneg %p80
      $region18: #{residual_block.1} parent=11 // pred_check_branch
        %189 = sbr.rel (%p187) target = $region20
      $region19: #{residual_block.1} parent=11 // pred_region
        _
      $region20: #{residual_block.1} parent=11 // pred_fallthru
        _
      // Predicated region
      $region21: #{residual_block.1} parent=11 // pred_check
        %p190 = pneg %p101
      $region22: #{residual_block.1} parent=11 // pred_check_branch
        %192 = sbr.rel (%p190) target = $region24
      $region23: #{residual_block.1} parent=11 // pred_region
        _
      $region24: #{residual_block.1} parent=11 // pred_fallthru
        _
      // Predicated region
      $region25: #{residual_block.1} parent=11 // pred_check
        %p193 = pneg %p122
      $region26: #{residual_block.1} parent=11 // pred_check_branch
        %195 = sbr.rel (%p193) target = $region28
      $region27: #{residual_block.1} parent=11 // pred_region
        _
      $region28: #{residual_block.1} parent=11 // pred_fallthru
        _
      // Predicated region
      $region29: #{residual_block.1} parent=11 // pred_check
        %p196 = pneg %p143
      $region30: #{residual_block.1} parent=11 // pred_check_branch
        %198 = sbr.rel (%p196) target = $region32
      $region31: #{residual_block.1} parent=11 // pred_region
        _
      $region32: #{residual_block.1} parent=11 // pred_fallthru
        _
    $region12: #{residual_block.1} parent=5 // pred_fallthru
      _
    %p199 = scmp.lt.s32.totalorder %s12, 2
    // Predicated region
    $region33: #{residual_block.1} parent=5 // pred_check
      %p200 = pneg %p199
    $region34: #{residual_block.1} parent=5 // pred_check_branch
      %202 = sbr.rel (%p200) target = $region36
    $region35: #{residual_block.1} parent=5 // pred_region
      // Predicated region
      $region37: #{residual_block.1} parent=35 // pred_check
        %p203 = pneg %p32
      $region38: #{residual_block.1} parent=35 // pred_check_branch
        %205 = sbr.rel (%p203) target = $region40
      $region39: #{residual_block.1} parent=35 // pred_region
        %s206 = smul.u32 2, %s12
        %p207 = scmp.lt.s32.totalorder %s206, 3
        %s208 = scalar_select %p207, %s206, 3
        %s209 = smul.addr %s208, 8
        %s210 = scalar_lea.vmem %s0, %s209
        %s211 = smul.u32 2, %s12
      $region40: #{residual_block.1} parent=35 // pred_fallthru
        _
    $region36: #{residual_block.1} parent=5 // pred_fallthru
      _
    %p212 = scmp.le.s32.totalorder 1, %s12
    %p213 = scmp.lt.s32.totalorder %s12, 3
    %p214 = pnand %p212, %p213
    %p215 = pneg %p214
    // Predicated region
    $region41: #{residual_block.1} parent=5 // pred_check
      _
    $region42: #{residual_block.1} parent=5 // pred_check_branch
      %217 = sbr.rel (%p214) target = $region44
    $region43: #{residual_block.1} parent=5 // pred_region
      %s218 = ssub.s32 %s12, 1
      %s219 = smul.u32 2, %s17
      %p220 = scmp.lt.s32.totalorder %s219, 3
      %s221 = scalar_select %p220, %s219, 3
      %s222 = smul.addr %s221, 8
      %s223 = scalar_lea.vmem %s0, %s222
      %p224 = pneg %p38
      %p225 = pneg %p35
      %p226 = pneg %p59
      %p227 = pneg %p56
      %p228 = pneg %p80
      %p229 = pneg %p77
      %p230 = pneg %p101
      %p231 = pneg %p98
      %p232 = pneg %p122
      %p233 = pneg %p119
      %p234 = pneg %p143
      %p235 = pneg %p140
      %p236 = pneg %p169
      %p237 = pneg %p166
      %s238 = smul.u32 2, %s17
      %p239 = scmp.lt.s32.totalorder %s238, 3
      %s240 = scalar_select %p239, %s238, 3
      %s241 = smul.addr %s240, 8
      %s242 = scalar_lea.vmem %s6, %s241
      %s243 = smul.u32 2, %s17
      %p244 = scmp.lt.s32.totalorder %s243, 3
      %s245 = scalar_select %p244, %s243, 3
      %s246 = smul.addr %s245, 8
      %s247 = scalar_lea.vmem %s0, %s246
      %s248 = smul.u32 2, %s17
      %s249 = smul.u32 2, %s17
      %p250 = scmp.lt.s32.totalorder %s249, 3
      %s251 = scalar_select %p250, %s249, 3
      %s252 = smul.addr %s251, 8
      %s253 = scalar_lea.vmem %s6, %s252
      %s254 = smul.u32 2, %s17
      %v256 = vld [vmem:[%s247] sm:$0xff]
      %v257 = vld [vmem:[%s247 + $0x8] sm:$0xff]
      %v258 = vld [vmem:[%s1] sm:$0xff]
      %v259 = vld [vmem:[%s1 + $0x8] sm:$0xff]
      %v260 = vld [vmem:[%s1 + $0x10] sm:$0xff]
      %v261 = vld [vmem:[%s1 + $0x18] sm:$0xff]
      %262 = vrot.lane.b32.xlu0 %v256, 17
      %v263 = vpop.permute.xlu0 %262
      %264 = vrot.lane.b32.xlu0 %v257, 17
      %v265 = vpop.permute.xlu0 %264
      %v266 = vlaneseq
      %v267 = vand.u32 %v266, 127
      %vm268 = vcmp.lt.s32.totalorder %v267, 17
      %v269 = vsel %vm268, %v263, %v265
      %v270 = vsel %vm268, %v265, %v263
      %v271 = vlaneseq
      %v272 = vshrl.u32 %v271, 7
      %v273 = vsub.s32 0, %v272
      %v274 = vrot.slane %v258, %v273
      %v275 = vlaneseq
      %v276 = vshrl.u32 %v275, 7
      %v277 = vsub.s32 0, %v276
      %v278 = vrot.slane %v259, %v277
      %v279 = vmul.f32 %v270, %v274
      %v280 = vmul.f32 %v269, %v278
      %281 = vst [vmem:[#allocation2] sm:$0xf] %v279
      %282 = vst [vmem:[#allocation2 + $0x8] sm:$0xf] %v280
      %283 = vrot.lane.b32.xlu0 %v256, 16
      %v284 = vpop.permute.xlu0 %283
      %285 = vrot.lane.b32.xlu0 %v257, 16
      %v286 = vpop.permute.xlu0 %285
      %vm287 = vcmp.lt.s32.totalorder %v267, 16
      %v288 = vsel %vm287, %v284, %v286
      %v289 = vsel %vm287, %v286, %v284
      %v290 = vlaneseq
      %v291 = vshrl.u32 %v290, 7
      %v292 = vsub.s32 1, %v291
      %v293 = vrot.slane %v258, %v292
      %v294 = vlaneseq
      %v295 = vshrl.u32 %v294, 7
      %v296 = vsub.s32 1, %v295
      %v297 = vrot.slane %v259, %v296
      %v298 = vmul.f32 %v289, %v293
      %v299 = vmul.f32 %v288, %v297
      %v302 = vrot.slane %v298, 4
      %v303 = vrot.slane %v299, 4
      %306 = vst [vmem:[#allocation2] sm:$0xf0] %v302
      %307 = vst [vmem:[#allocation2 + $0x8] sm:$0xf0] %v303
      %308 = vrot.lane.b32.xlu0 %v256, 15
      %v309 = vpop.permute.xlu0 %308
      %310 = vrot.lane.b32.xlu0 %v257, 15
      %v311 = vpop.permute.xlu0 %310
      %vm312 = vcmp.lt.s32.totalorder %v267, 15
      %v313 = vsel %vm312, %v309, %v311
      %v314 = vsel %vm312, %v311, %v309
      %v315 = vlaneseq
      %v316 = vshrl.u32 %v315, 7
      %v317 = vsub.s32 2, %v316
      %v318 = vrot.slane %v258, %v317
      %v319 = vlaneseq
      %v320 = vshrl.u32 %v319, 7
      %v321 = vsub.s32 2, %v320
      %v322 = vrot.slane %v259, %v321
      %v323 = vmul.f32 %v314, %v318
      %v324 = vmul.f32 %v313, %v322
      %325 = vst [vmem:[#allocation2 + $0x10] sm:$0xf] %v323
      %326 = vst [vmem:[#allocation2 + $0x18] sm:$0xf] %v324
      %327 = vrot.lane.b32.xlu0 %v256, 1
      %v328 = vpop.permute.xlu0 %327
      %329 = vrot.lane.b32.xlu0 %v257, 1
      %v330 = vpop.permute.xlu0 %329
      %vm331 = vcmp.lt.s32.totalorder %v267, 1
      %v332 = vsel %vm331, %v328, %v330
      %v333 = vsel %vm331, %v330, %v328
      %v334 = vlaneseq
      %v335 = vshrl.u32 %v334, 7
      %v336 = vsub.s32 3, %v335
      %v337 = vrot.slane %v258, %v336
      %v338 = vlaneseq
      %v339 = vshrl.u32 %v338, 7
      %v340 = vsub.s32 3, %v339
      %v341 = vrot.slane %v259, %v340
      %v342 = vmul.f32 %v333, %v337
      %v343 = vmul.f32 %v332, %v341
      %v346 = vrot.slane %v342, 4
      %v347 = vrot.slane %v343, 4
      %350 = vst [vmem:[#allocation2 + $0x10] sm:$0xf0] %v346
      %351 = vst [vmem:[#allocation2 + $0x18] sm:$0xf0] %v347
      %352 = vst [vmem:[#allocation2 + $0x20] sm:$0xf] %v256
      %353 = vst [vmem:[#allocation2 + $0x28] sm:$0xf] %v257
      %354 = vrot.lane.b32.xlu0 %v256, 127
      %v355 = vpop.permute.xlu0 %354
      %356 = vrot.lane.b32.xlu0 %v257, 127
      %v357 = vpop.permute.xlu0 %356
      %vm358 = vcmp.lt.s32.totalorder %v267, 127
      %v359 = vsel %vm358, %v355, %v357
      %v360 = vsel %vm358, %v357, %v355
      %v361 = vlaneseq
      %v362 = vshrl.u32 %v361, 7
      %v363 = vsub.s32 5, %v362
      %v364 = vrot.slane %v258, %v363
      %v365 = vlaneseq
      %v366 = vshrl.u32 %v365, 7
      %v367 = vsub.s32 5, %v366
      %v368 = vrot.slane %v259, %v367
      %v369 = vmul.f32 %v359, %v364
      %v370 = vmul.f32 %v360, %v368
      %v373 = vrot.slane %v369, 4
      %v374 = vrot.slane %v370, 4
      %377 = vst [vmem:[#allocation2 + $0x20] sm:$0xf0] %v373
      %378 = vst [vmem:[#allocation2 + $0x28] sm:$0xf0] %v374
      %379 = vrot.lane.b32.xlu0 %v256, 113
      %v380 = vpop.permute.xlu0 %379
      %381 = vrot.lane.b32.xlu0 %v257, 113
      %v382 = vpop.permute.xlu0 %381
      %vm383 = vcmp.lt.s32.totalorder %v267, 113
      %v384 = vsel %vm383, %v380, %v382
      %v385 = vsel %vm383, %v382, %v380
      %v386 = vlaneseq
      %v387 = vshrl.u32 %v386, 7
      %v388 = vsub.s32 6, %v387
      %v389 = vrot.slane %v258, %v388
      %v390 = vlaneseq
      %v391 = vshrl.u32 %v390, 7
      %v392 = vsub.s32 6, %v391
      %v393 = vrot.slane %v259, %v392
      %v394 = vmul.f32 %v384, %v389
      %v395 = vmul.f32 %v385, %v393
      %396 = vst [vmem:[#allocation2 + $0x30] sm:$0xf] %v394
      %397 = vst [vmem:[#allocation2 + $0x38] sm:$0xf] %v395
      %398 = vrot.lane.b32.xlu0 %v256, 112
      %v399 = vpop.permute.xlu0 %398
      %400 = vrot.lane.b32.xlu0 %v257, 112
      %v401 = vpop.permute.xlu0 %400
      %vm402 = vcmp.lt.s32.totalorder %v267, 112
      %v403 = vsel %vm402, %v399, %v401
      %v404 = vsel %vm402, %v401, %v399
      %v405 = vlaneseq
      %v406 = vshrl.u32 %v405, 7
      %v407 = vsub.s32 7, %v406
      %v408 = vrot.slane %v258, %v407
      %v409 = vlaneseq
      %v410 = vshrl.u32 %v409, 7
      %v411 = vsub.s32 7, %v410
      %v412 = vrot.slane %v259, %v411
      %v413 = vmul.f32 %v403, %v408
      %v414 = vmul.f32 %v404, %v412
      %v417 = vrot.slane %v413, 4
      %v418 = vrot.slane %v414, 4
      %421 = vst [vmem:[#allocation2 + $0x30] sm:$0xf0] %v417
      %422 = vst [vmem:[#allocation2 + $0x38] sm:$0xf0] %v418
      %423 = vrot.lane.b32.xlu0 %v256, 111
      %v424 = vpop.permute.xlu0 %423
      %425 = vrot.lane.b32.xlu0 %v257, 111
      %v426 = vpop.permute.xlu0 %425
      %vm427 = vcmp.lt.s32.totalorder %v267, 111
      %v428 = vsel %vm427, %v424, %v426
      %v429 = vsel %vm427, %v426, %v424
      %v430 = vlaneseq
      %v431 = vshrl.u32 %v430, 7
      %v432 = vsub.s32 0, %v431
      %v433 = vrot.slane %v260, %v432
      %v434 = vlaneseq
      %v435 = vshrl.u32 %v434, 7
      %v436 = vsub.s32 0, %v435
      %v437 = vrot.slane %v261, %v436
      %v438 = vmul.f32 %v428, %v433
      %v439 = vmul.f32 %v429, %v437
      %440 = vst [vmem:[#allocation2 + $0x40] sm:$0xf] %v438
      %441 = vst [vmem:[#allocation2 + $0x48] sm:$0xf] %v439
      %v442 = vld [vmem:[%s2] sm:$0xf]
      %v443 = vld [vmem:[#allocation2] sm:$0xff]
      %v444 = vld [vmem:[#allocation2 + $0x8] sm:$0xff]
      %v445 = vld [vmem:[#allocation2 + $0x10] sm:$0xff]
      %v446 = vld [vmem:[#allocation2 + $0x18] sm:$0xff]
      %v447 = vld [vmem:[#allocation2 + $0x20] sm:$0xff]
      %v448 = vld [vmem:[#allocation2 + $0x28] sm:$0xff]
      %v449 = vld [vmem:[#allocation2 + $0x30] sm:$0xff]
      %v450 = vld [vmem:[#allocation2 + $0x38] sm:$0xff]
      %v451 = vld [vmem:[#allocation2 + $0x40] sm:$0xf]
      %v452 = vld [vmem:[#allocation2 + $0x48] sm:$0xf]
      %v453 = vpack.c.bf16 %v445, %v443
      %v454 = vpack.c.bf16 %v446, %v444
      %v455 = vpack.c.bf16 %v449, %v447
      %v456 = vpack.c.bf16 %v450, %v448
      %v457 = vpack.c.bf16 %v451, %v451
      %v458 = vpack.c.bf16 %v452, %v452
      %v459 = vld [vmem:[%s3] sm:$0xff]
      %461 = vset.pattern.permute.xlu0 0
      %462 = vperm.xlu0 %461, %v459
      %v463 = vpop.permute.xlu0 %462
      %vm465 = vcmask 293888
      %v467 = vsel %vm465, %v442, 0
      %vm469 = vcmask 1041408
      %v471 = vsel %vm469, %v457, 0
      %v474 = vsel %vm469, %v458, 0
      %476 = vmatprep.subr.bf16.mxu0 0
      %477 = vmatpush1.bf16.msra.mxu0 0
      %478 = vmatprep.subr.bf16.mxu0 0
      %479 = vmatpush1.bf16.msra.mxu0 0
      %480 = vmatprep.subr.bf16.mxu0 0
      %481 = vmatpush1.bf16.msra.mxu0 0
      %482 = vmatprep.subr.bf16.mxu0 0
      %483 = vmatpush1.bf16.msra.mxu0 0
      %484 = vmatprep.subr.bf16.mxu0 0
      %485 = vmatpush1.bf16.msra.mxu0 0
      %486 = vmatprep.subr.bf16.mxu0 %v474
      %487 = vmatpush1.bf16.msra.mxu0 %v471
      %488 = vmatprep.subr.bf16.mxu0 %v456
      %489 = vmatpush1.bf16.msra.mxu0 %v455
      %490 = vmatprep.subr.bf16.mxu0 %v454
      %491 = vmatpush1.bf16.msra.mxu0 %v453
      %492 = vmatprep.subr.bf16.mxu0 0
      %493 = vmatpush2.bf16.msra.mxu0 0
      %494 = vmatprep.subr.bf16.mxu0 0
      %495 = vmatpush2.bf16.msra.mxu0 0
      %496 = vmatprep.subr.bf16.mxu0 0
      %497 = vmatpush2.bf16.msra.mxu0 0
      %498 = vmatprep.subr.bf16.mxu0 0
      %499 = vmatpush2.bf16.msra.mxu0 0
      %500 = vmatprep.subr.bf16.mxu0 0
      %501 = vmatpush2.bf16.msra.mxu0 0
      %502 = vmatprep.subr.bf16.mxu0 0
      %503 = vmatpush2.bf16.msra.mxu0 0
      %504 = vmatprep.subr.bf16.mxu0 0
      %505 = vmatpush2.bf16.msra.mxu0 0
      %506 = vmatprep.subr.bf16.mxu0 0
      %507 = vmatpush2.bf16.msra.mxu0 0
      %508 = vmatprep.mubr.bf16.mxu0 0
      %509 = vmatmul.mubr.bf16.gmra.mxu0 %v467
      %v510 = vpop.f32.mrf.mxu0
      %v511 = vadd.f32 %v463, %v510
      %v512 = vpop.f32.mrf.mxu0
      %v513 = vadd.f32 %v463, %v512
      %v514 = vpop.f32.mrf.mxu0
      %v515 = vpop.f32.mrf.mxu0
      %516 = vdwg.mxu0
      %v517 = vmax.f32 %v511, 0.0
      %v518 = vmax.f32 %v513, 0.0
      %519 = vrot.lane.b32.xlu0 %v517, 17
      %v520 = vpop.permute.xlu0 %519
      %521 = vrot.lane.b32.xlu0 %v518, 17
      %v522 = vpop.permute.xlu0 %521
      %v523 = vsel %vm268, %v520, %v522
      %v524 = vsel %vm268, %v522, %v520
      %v525 = vmul.f32 %v524, %v274
      %v526 = vmul.f32 %v523, %v278
      %527 = vst [vmem:[#allocation3] sm:$0xff] %v525
      %528 = vst [vmem:[#allocation3 + $0x8] sm:$0xff] %v526
      %529 = vrot.lane.b32.xlu0 %v517, 16
      %v530 = vpop.permute.xlu0 %529
      %531 = vrot.lane.b32.xlu0 %v518, 16
      %v532 = vpop.permute.xlu0 %531
      %v533 = vsel %vm287, %v530, %v532
      %v534 = vsel %vm287, %v532, %v530
      %v535 = vmul.f32 %v534, %v293
      %v536 = vmul.f32 %v533, %v297
      %537 = vst [vmem:[#allocation3 + $0x10] sm:$0xff] %v535
      %538 = vst [vmem:[#allocation3 + $0x18] sm:$0xff] %v536
      %539 = vrot.lane.b32.xlu0 %v517, 15
      %v540 = vpop.permute.xlu0 %539
      %541 = vrot.lane.b32.xlu0 %v518, 15
      %v542 = vpop.permute.xlu0 %541
      %v543 = vsel %vm312, %v540, %v542
      %v544 = vsel %vm312, %v542, %v540
      %v545 = vmul.f32 %v544, %v318
      %v546 = vmul.f32 %v543, %v322
      %547 = vst [vmem:[#allocation3 + $0x20] sm:$0xff] %v545
      %548 = vst [vmem:[#allocation3 + $0x28] sm:$0xff] %v546
      %549 = vrot.lane.b32.xlu0 %v517, 1
      %v550 = vpop.permute.xlu0 %549
      %551 = vrot.lane.b32.xlu0 %v518, 1
      %v552 = vpop.permute.xlu0 %551
      %v553 = vsel %vm331, %v550, %v552
      %v554 = vsel %vm331, %v552, %v550
      %v555 = vmul.f32 %v554, %v337
      %v556 = vmul.f32 %v553, %v341
      %557 = vst [vmem:[#allocation3 + $0x30] sm:$0xff] %v555
      %558 = vst [vmem:[#allocation3 + $0x38] sm:$0xff] %v556
      %559 = vst [vmem:[#allocation3 + $0x40] sm:$0xff] %v517
      %560 = vst [vmem:[#allocation3 + $0x48] sm:$0xff] %v518
      %561 = vrot.lane.b32.xlu0 %v517, 127
      %v562 = vpop.permute.xlu0 %561
      %563 = vrot.lane.b32.xlu0 %v518, 127
      %v564 = vpop.permute.xlu0 %563
      %v565 = vsel %vm358, %v562, %v564
      %v566 = vsel %vm358, %v564, %v562
      %v567 = vmul.f32 %v565, %v364
      %v568 = vmul.f32 %v566, %v368
      %569 = vst [vmem:[#allocation3 + $0x50] sm:$0xff] %v567
      %570 = vst [vmem:[#allocation3 + $0x58] sm:$0xff] %v568
      %571 = vrot.lane.b32.xlu0 %v517, 113
      %v572 = vpop.permute.xlu0 %571
      %573 = vrot.lane.b32.xlu0 %v518, 113
      %v574 = vpop.permute.xlu0 %573
      %v575 = vsel %vm383, %v572, %v574
      %v576 = vsel %vm383, %v574, %v572
      %v577 = vmul.f32 %v575, %v389
      %v578 = vmul.f32 %v576, %v393
      %579 = vst [vmem:[#allocation3 + $0x60] sm:$0xff] %v577
      %580 = vst [vmem:[#allocation3 + $0x68] sm:$0xff] %v578
      %581 = vrot.lane.b32.xlu0 %v517, 112
      %v582 = vpop.permute.xlu0 %581
      %583 = vrot.lane.b32.xlu0 %v518, 112
      %v584 = vpop.permute.xlu0 %583
      %v585 = vsel %vm402, %v582, %v584
      %v586 = vsel %vm402, %v584, %v582
      %v587 = vmul.f32 %v585, %v408
      %v588 = vmul.f32 %v586, %v412
      %589 = vst [vmem:[#allocation3 + $0x70] sm:$0xff] %v587
      %590 = vst [vmem:[#allocation3 + $0x78] sm:$0xff] %v588
      %591 = vrot.lane.b32.xlu0 %v517, 111
      %v592 = vpop.permute.xlu0 %591
      %593 = vrot.lane.b32.xlu0 %v518, 111
      %v594 = vpop.permute.xlu0 %593
      %v595 = vsel %vm427, %v592, %v594
      %v596 = vsel %vm427, %v594, %v592
      %v597 = vmul.f32 %v595, %v433
      %v598 = vmul.f32 %v596, %v437
      %599 = vst [vmem:[#allocation3 + $0x80] sm:$0xff] %v597
      %600 = vst [vmem:[#allocation3 + $0x88] sm:$0xff] %v598
      %601 = vst [vmem:[#allocation3 + $0x90] sm:$0xff] %v256
      %602 = vst [vmem:[#allocation3 + $0x98] sm:$0xff] %v257
      %v603 = vld [vmem:[%s4] sm:$0xf]
      %v604 = vld [vmem:[#allocation3] sm:$0xff]
      %v605 = vld [vmem:[#allocation3 + $0x8] sm:$0xff]
      %v606 = vld [vmem:[#allocation3 + $0x10] sm:$0xff]
      %v607 = vld [vmem:[#allocation3 + $0x18] sm:$0xff]
      %v608 = vld [vmem:[#allocation3 + $0x20] sm:$0xff]
      %v609 = vld [vmem:[#allocation3 + $0x28] sm:$0xff]
      %v610 = vld [vmem:[#allocation3 + $0x30] sm:$0xff]
      %v611 = vld [vmem:[#allocation3 + $0x38] sm:$0xff]
      %v612 = vld [vmem:[#allocation3 + $0x40] sm:$0xff]
      %v613 = vld [vmem:[#allocation3 + $0x48] sm:$0xff]
      %v614 = vld [vmem:[#allocation3 + $0x50] sm:$0xff]
      %v615 = vld [vmem:[#allocation3 + $0x58] sm:$0xff]
      %v616 = vld [vmem:[#allocation3 + $0x60] sm:$0xff]
      %v617 = vld [vmem:[#allocation3 + $0x68] sm:$0xff]
      %v618 = vld [vmem:[#allocation3 + $0x70] sm:$0xff]
      %v619 = vld [vmem:[#allocation3 + $0x78] sm:$0xff]
      %v620 = vld [vmem:[#allocation3 + $0x80] sm:$0xff]
      %v621 = vld [vmem:[#allocation3 + $0x88] sm:$0xff]
      %v622 = vld [vmem:[#allocation3 + $0x90] sm:$0xff]
      %v623 = vld [vmem:[#allocation3 + $0x98] sm:$0xff]
      %v624 = vpack.c.bf16 %v606, %v604
      %v625 = vpack.c.bf16 %v607, %v605
      %v626 = vpack.c.bf16 %v610, %v608
      %v627 = vpack.c.bf16 %v611, %v609
      %v628 = vpack.c.bf16 %v614, %v612
      %v629 = vpack.c.bf16 %v615, %v613
      %v630 = vpack.c.bf16 %v618, %v616
      %v631 = vpack.c.bf16 %v619, %v617
      %v632 = vpack.c.bf16 %v622, %v620
      %v633 = vpack.c.bf16 %v623, %v621
      %v634 = vld [vmem:[%s5] sm:$0xff]
      %636 = vset.pattern.permute.xlu0 0
      %637 = vperm.xlu0 %636, %v634
      %v638 = vpop.permute.xlu0 %637
      %vm640 = vcmask 654336
      %v642 = vsel %vm640, %v603, 0
      %644 = vmatprep.subr.bf16.mxu0 0
      %645 = vmatpush1.bf16.msra.mxu0 0
      %646 = vmatprep.subr.bf16.mxu0 0
      %647 = vmatpush1.bf16.msra.mxu0 0
      %648 = vmatprep.subr.bf16.mxu0 0
      %649 = vmatpush1.bf16.msra.mxu0 0
      %650 = vmatprep.subr.bf16.mxu0 %v633
      %651 = vmatpush1.bf16.msra.mxu0 %v632
      %652 = vmatprep.subr.bf16.mxu0 %v631
      %653 = vmatpush1.bf16.msra.mxu0 %v630
      %654 = vmatprep.subr.bf16.mxu0 %v629
      %655 = vmatpush1.bf16.msra.mxu0 %v628
      %656 = vmatprep.subr.bf16.mxu0 %v627
      %657 = vmatpush1.bf16.msra.mxu0 %v626
      %658 = vmatprep.subr.bf16.mxu0 %v625
      %659 = vmatpush1.bf16.msra.mxu0 %v624
      %660 = vmatprep.subr.bf16.mxu0 0
      %661 = vmatpush2.bf16.msra.mxu0 0
      %662 = vmatprep.subr.bf16.mxu0 0
      %663 = vmatpush2.bf16.msra.mxu0 0
      %664 = vmatprep.subr.bf16.mxu0 0
      %665 = vmatpush2.bf16.msra.mxu0 0
      %666 = vmatprep.subr.bf16.mxu0 0
      %667 = vmatpush2.bf16.msra.mxu0 0
      %668 = vmatprep.subr.bf16.mxu0 0
      %669 = vmatpush2.bf16.msra.mxu0 0
      %670 = vmatprep.subr.bf16.mxu0 0
      %671 = vmatpush2.bf16.msra.mxu0 0
      %672 = vmatprep.subr.bf16.mxu0 0
      %673 = vmatpush2.bf16.msra.mxu0 0
      %674 = vmatprep.subr.bf16.mxu0 0
      %675 = vmatpush2.bf16.msra.mxu0 0
      %676 = vmatprep.mubr.bf16.mxu0 0
      %677 = vmatmul.mubr.bf16.gmra.mxu0 %v642
      %v678 = vpop.f32.mrf.mxu0
      %v679 = vadd.f32 %v638, %v678
      %v680 = vpop.f32.mrf.mxu0
      %v681 = vadd.f32 %v638, %v680
      %v682 = vpop.f32.mrf.mxu0
      %v683 = vpop.f32.mrf.mxu0
      %684 = vdwg.mxu0
      %v685 = vmax.f32 %v679, 0.0
      %v686 = vmax.f32 %v681, 0.0
      %687 = vst [vmem:[%s253] sm:$0xff] %v685
      %688 = vst [vmem:[%s253 + $0x8] sm:$0xff] %v686
      %s689 = smul.u32 2, %s17
      %p690 = scmp.lt.s32.totalorder %s689, 3
      %s691 = scalar_select %p690, %s689, 3
      %s692 = smul.addr %s691, 8
      %s693 = scalar_lea.vmem %s6, %s692
      // Predicated region
      $region45: #{residual_block.1} parent=43 // pred_check
        %p694 = pneg %p166
      $region46: #{residual_block.1} parent=43 // pred_check_branch
        %696 = sbr.rel (%p694) target = $region48
      $region47: #{residual_block.1} parent=43 // pred_region
        %s697 = smul.u32 2, %s17
      $region48: #{residual_block.1} parent=43 // pred_fallthru
        _
    $region44: #{residual_block.1} parent=5 // pred_fallthru
      _
    %p698 = scmp.le.s32.totalorder 2, %s12
    // Predicated region
    $region49: #{residual_block.1} parent=5 // pred_check
      %p699 = pneg %p698
    $region50: #{residual_block.1} parent=5 // pred_check_branch
      %701 = sbr.rel (%p699) target = $region52
    $region51: #{residual_block.1} parent=5 // pred_region
      %s702 = ssub.s32 %s12, 2
      // Predicated region
      $region53: #{residual_block.1} parent=51 // pred_check
        %p703 = pneg %p172
      $region54: #{residual_block.1} parent=51 // pred_check_branch
        %705 = sbr.rel (%p703) target = $region56
      $region55: #{residual_block.1} parent=51 // pred_region
        %s706 = smul.u32 2, %s18
        %p707 = scmp.lt.s32.totalorder %s706, 3
        %s708 = scalar_select %p707, %s706, 3
        %s709 = smul.addr %s708, 8
        %s710 = scalar_lea.vmem %s6, %s709
      $region56: #{residual_block.1} parent=51 // pred_fallthru
        _
    $region52: #{residual_block.1} parent=5 // pred_fallthru
      _
  $region6: #{residual_block.1} parent=0 // loop_footer
    %s16 = sadd.s32 1, %s12
  $region7: #{residual_block.1} parent=0 // loop_footer_branch
    %11 = sbr.rel target = $region3
  $region8: #{residual_block.1} parent=0 // loop_exit
    _

</llo_original>
